<compile_context>
chip_gen: v7x
topology: tpu7x:2x2x1
jax: 0.10.0
libtpu: 0.0.40
codegen_flags: <defaults>
</compile_context>

<pallas_src>
import functools

import jax
import jax.numpy as jnp
from jax import lax
from jax.experimental import pallas as pl
from jax.experimental.pallas import tpu as pltpu

_LANE = 128


def _wtsm_kernel(x_ref, o_ref, *, n_segment, fold, fold2, n_channels):
    """Copy one (bblk, T, C, hw_blk) block applying the wrapping time shift.

    channels [0, fold)      : shifted left in time  (last segment wraps to first)
    channels [fold, fold2)  : shifted right in time (first segment wraps to last)
    channels [fold2, C)     : passthrough
    All offsets are compile-time constants, so every statement is a plain
    bulk VMEM slice move.
    """
    T = n_segment
    C = n_channels

    if fold == 0 or T == 1:
        # Degenerate configs reduce to the identity copy.
        o_ref[...] = x_ref[...]
        return

    # Group 0: left shift with wrap — two bulk copies regardless of T.
    o_ref[:, 0:T - 1, 0:fold, :] = x_ref[:, 1:T, 0:fold, :]
    o_ref[:, T - 1:T, 0:fold, :] = x_ref[:, 0:1, 0:fold, :]

    # Group 1: right shift with wrap.
    if fold2 > fold:
        o_ref[:, 1:T, fold:fold2, :] = x_ref[:, 0:T - 1, fold:fold2, :]
        o_ref[:, 0:1, fold:fold2, :] = x_ref[:, T - 1:T, fold:fold2, :]

    # Group 2: passthrough.
    if fold2 < C:
        o_ref[:, :, fold2:C, :] = x_ref[:, :, fold2:C, :]


def _choose_tiling(n_batch, T, C, HW, itemsize, target_block_bytes, min_steps):
    """Return (bblk, hw_blk): batches per block and lane-axis chunk length."""
    per_batch_bytes = T * C * HW * itemsize

    if per_batch_bytes <= target_block_bytes:
        # Tile over whole batches; keep enough grid steps for pipelining and
        # prefer an even grid length (v7x has 2 TensorCores).
        max_bblk = max(1, target_block_bytes // per_batch_bytes)
        want_steps = min(min_steps, n_batch)
        divisors = [d for d in range(1, n_batch + 1) if n_batch % d == 0]
        candidates = [d for d in divisors
                      if d <= max_bblk and n_batch // d >= want_steps]
        even = [d for d in candidates if (n_batch // d) % 2 == 0]
        pool = even if even else candidates
        return max(pool), HW

    # A single batch exceeds the budget: split the lane axis (H*W) into
    # 128-aligned chunks so blocks still satisfy the (8, 128) constraint and
    # fit VMEM (hard requirement on v7x's 64 MiB).
    if HW % _LANE == 0:
        n_lane_chunks = HW // _LANE
        budget_chunks = max(1, target_block_bytes // (T * C * _LANE * itemsize))
        cblk = 1
        for d in range(1, n_lane_chunks + 1):
            if n_lane_chunks % d == 0 and d <= budget_chunks:
                cblk = d
        return 1, cblk * _LANE

    # TODO(synk): for H*W not a multiple of 128, split C at the group
    # boundaries (0, fold, 2*fold) instead; fall back to one full batch.
    return 1, HW


def wtsm_forward(x, n_segment: int = 3, fold_div: int = 3,
                 *, target_block_bytes: int = 4 * 1024 * 1024,
                 min_grid_steps: int = 4):
    """Pallas implementation of WTSM.forward. x: (BT, C, H, W) array."""
    BT, C, H, W = x.shape
    T = int(n_segment)
    assert BT % T == 0, "BT must be divisible by n_segment"
    n_batch = BT // T
    fold = C // int(fold_div)
    fold2 = min(2 * fold, C)   # explicit clamp (fold_div == 1 makes 2*fold > C)
    HW = H * W

    # Sub-word dtypes: repack pairs/quads along H*W into one u32 word so all
    # channel-group slices stay at full-word granularity (pure bitcast; the
    # pairing is along H*W, never across the fold boundary).
    itemsize = x.dtype.itemsize
    pack = 4 // itemsize if itemsize in (1, 2) else 1
    if pack > 1 and HW % pack == 0:
        hw_work = HW // pack
        x_work = lax.bitcast_convert_type(
            x.reshape(n_batch, T, C, hw_work, pack), jnp.uint32)
        work_dtype = jnp.uint32
        work_itemsize = 4
    else:
        pack = 1
        hw_work = HW
        x_work = x.reshape(n_batch, T, C, HW)
        work_dtype = x.dtype
        work_itemsize = itemsize

    bblk, hw_blk = _choose_tiling(n_batch, T, C, hw_work, work_itemsize,
                                  target_block_bytes, min_grid_steps)
    blk = (bblk, T, C, hw_blk)          # last two dims: full C, 128-aligned HW
    grid = (n_batch // bblk, hw_work // hw_blk)

    total_bytes = n_batch * T * C * hw_work * work_itemsize
    out_work = pl.pallas_call(
        functools.partial(_wtsm_kernel, n_segment=T, fold=fold, fold2=fold2,
                          n_channels=C),
        out_shape=jax.ShapeDtypeStruct((n_batch, T, C, hw_work), work_dtype),
        grid=grid,
        in_specs=[pl.BlockSpec(blk, lambda b, h: (b, 0, 0, h))],
        out_specs=pl.BlockSpec(blk, lambda b, h: (b, 0, 0, h)),
        compiler_params=pltpu.CompilerParams(
            dimension_semantics=("parallel", "parallel")),
        cost_estimate=pl.CostEstimate(
            flops=0, transcendentals=0, bytes_accessed=2 * total_bytes),
    )(x_work)

    if pack > 1:
        out = lax.bitcast_convert_type(out_work, x.dtype)  # (..., hw_work, pack)
        return out.reshape(BT, C, H, W)
    return out_work.reshape(BT, C, H, W)


def wtsm_reference(x, n_segment: int = 3, fold_div: int = 3):
    """Pure-JAX reference mirroring the PyTorch forward exactly."""
    BT, C, H, W = x.shape
    T = n_segment
    n_batch = BT // T
    fold = C // fold_div
    x5 = x.reshape(n_batch, T, C, H, W)
    out = jnp.zeros_like(x5)
    out = out.at[:, :T - 1, :fold].set(x5[:, 1:, :fold])
    out = out.at[:, T - 1, :fold].set(x5[:, 0, :fold])
    out = out.at[:, 1:, fold:2 * fold].set(x5[:, :T - 1, fold:2 * fold])
    out = out.at[:, 0, fold:2 * fold].set(x5[:, T - 1, fold:2 * fold])
    out = out.at[:, :, 2 * fold:].set(x5[:, :, 2 * fold:])
    return out.reshape(BT, C, H, W)


if __name__ == "__main__":
    n_segment = 3
    fold_div = 3
    n_batch = 2
    C, H, W = 4, 16, 16
    BT = n_batch * n_segment  # 6

    key = jax.random.PRNGKey(0)
    x = jax.random.normal(key, (BT, C, H, W), dtype=jnp.float32)

    out = jax.block_until_ready(
        wtsm_forward(x, n_segment=n_segment, fold_div=fold_div))
    ref = wtsm_reference(x, n_segment=n_segment, fold_div=fold_div)
    assert out.shape == x.shape and out.dtype == x.dtype
    assert jnp.array_equal(out, ref), "Pallas WTSM (f32) mismatch vs reference"

    # Also exercise the packed sub-word path (bf16 viewed as u32 along H*W).
    xb = x.astype(jnp.bfloat16)
    outb = jax.block_until_ready(
        wtsm_forward(xb, n_segment=n_segment, fold_div=fold_div))
    refb = wtsm_reference(xb, n_segment=n_segment, fold_div=fold_div)
    assert outb.shape == xb.shape and outb.dtype == xb.dtype
    assert jnp.array_equal(outb, refb), "Pallas WTSM (bf16) mismatch vs reference"

    print("KERNEL_OK")
</pallas_src>

<mosaic_0001>
module attributes {stable_mosaic.version = 11 : i64} {
  func.func @_wtsm_kernel(%arg0: i32, %arg1: i32, %arg2: memref<1x3x4x256xf32, #tpu.memory_space<vmem>>, %arg3: memref<1x3x4x256xf32, #tpu.memory_space<vmem>>) attributes {dimension_semantics = [#tpu.dimension_semantics<parallel>, #tpu.dimension_semantics<parallel>], iteration_bounds = array<i64: 2, 1>, scalar_prefetch = 0 : i64, scratch_operands = 0 : i64, tpu.core_type = #tpu.core_type<tc>, window_params = [{transform_indices = @transform_0, window_bounds = array<i64: 1, 3, 4, 256>}, {transform_indices = @transform_1, window_bounds = array<i64: 1, 3, 4, 256>}]} {
    %c0 = arith.constant 0 : index
    %c1 = arith.constant 1 : index
    %c0_0 = arith.constant 0 : index
    %c0_1 = arith.constant 0 : index
    %0 = vector.load %arg2[%c0, %c1, %c0_0, %c0_1] : memref<1x3x4x256xf32, #tpu.memory_space<vmem>>, vector<1x2x1x256xf32>
    %c0_2 = arith.constant 0 : index
    %c0_3 = arith.constant 0 : index
    %c0_4 = arith.constant 0 : index
    %c0_5 = arith.constant 0 : index
    %1 = vector.load %arg3[%c0_2, %c0_3, %c0_4, %c0_5] : memref<1x3x4x256xf32, #tpu.memory_space<vmem>>, vector<1x2x1x256xf32>
    tpu.vector_store %arg3[%c0_2, %c0_3, %c0_4, %c0_5], %0 {strides = array<i32>} : memref<1x3x4x256xf32, #tpu.memory_space<vmem>>, vector<1x2x1x256xf32>,
    %c0_6 = arith.constant 0 : index
    %c0_7 = arith.constant 0 : index
    %c0_8 = arith.constant 0 : index
    %c0_9 = arith.constant 0 : index
    %2 = vector.load %arg2[%c0_6, %c0_7, %c0_8, %c0_9] : memref<1x3x4x256xf32, #tpu.memory_space<vmem>>, vector<1x1x1x256xf32>
    %c0_10 = arith.constant 0 : index
    %c2 = arith.constant 2 : index
    %c0_11 = arith.constant 0 : index
    %c0_12 = arith.constant 0 : index
    %3 = vector.load %arg3[%c0_10, %c2, %c0_11, %c0_12] : memref<1x3x4x256xf32, #tpu.memory_space<vmem>>, vector<1x1x1x256xf32>
    tpu.vector_store %arg3[%c0_10, %c2, %c0_11, %c0_12], %2 {strides = array<i32>} : memref<1x3x4x256xf32, #tpu.memory_space<vmem>>, vector<1x1x1x256xf32>,
    %c0_13 = arith.constant 0 : index
    %c0_14 = arith.constant 0 : index
    %c1_15 = arith.constant 1 : index
    %c0_16 = arith.constant 0 : index
    %4 = vector.load %arg2[%c0_13, %c0_14, %c1_15, %c0_16] : memref<1x3x4x256xf32, #tpu.memory_space<vmem>>, vector<1x2x1x256xf32>
    %c0_17 = arith.constant 0 : index
    %c1_18 = arith.constant 1 : index
    %c1_19 = arith.constant 1 : index
    %c0_20 = arith.constant 0 : index
    %5 = vector.load %arg3[%c0_17, %c1_18, %c1_19, %c0_20] : memref<1x3x4x256xf32, #tpu.memory_space<vmem>>, vector<1x2x1x256xf32>
    tpu.vector_store %arg3[%c0_17, %c1_18, %c1_19, %c0_20], %4 {strides = array<i32>} : memref<1x3x4x256xf32, #tpu.memory_space<vmem>>, vector<1x2x1x256xf32>,
    %c0_21 = arith.constant 0 : index
    %c2_22 = arith.constant 2 : index
    %c1_23 = arith.constant 1 : index
    %c0_24 = arith.constant 0 : index
    %6 = vector.load %arg2[%c0_21, %c2_22, %c1_23, %c0_24] : memref<1x3x4x256xf32, #tpu.memory_space<vmem>>, vector<1x1x1x256xf32>
    %c0_25 = arith.constant 0 : index
    %c0_26 = arith.constant 0 : index
    %c1_27 = arith.constant 1 : index
    %c0_28 = arith.constant 0 : index
    %7 = vector.load %arg3[%c0_25, %c0_26, %c1_27, %c0_28] : memref<1x3x4x256xf32, #tpu.memory_space<vmem>>, vector<1x1x1x256xf32>
    tpu.vector_store %arg3[%c0_25, %c0_26, %c1_27, %c0_28], %6 {strides = array<i32>} : memref<1x3x4x256xf32, #tpu.memory_space<vmem>>, vector<1x1x1x256xf32>,
    %c0_29 = arith.constant 0 : index
    %c0_30 = arith.constant 0 : index
    %c2_31 = arith.constant 2 : index
    %c0_32 = arith.constant 0 : index
    %8 = vector.load %arg2[%c0_29, %c0_30, %c2_31, %c0_32] : memref<1x3x4x256xf32, #tpu.memory_space<vmem>>, vector<1x3x2x256xf32>
    %c0_33 = arith.constant 0 : index
    %c0_34 = arith.constant 0 : index
    %c2_35 = arith.constant 2 : index
    %c0_36 = arith.constant 0 : index
    %9 = vector.load %arg3[%c0_33, %c0_34, %c2_35, %c0_36] : memref<1x3x4x256xf32, #tpu.memory_space<vmem>>, vector<1x3x2x256xf32>
    tpu.vector_store %arg3[%c0_33, %c0_34, %c2_35, %c0_36], %8 {strides = array<i32>} : memref<1x3x4x256xf32, #tpu.memory_space<vmem>>, vector<1x3x2x256xf32>,
    return
  }
  func.func @transform_0(%arg0: i32, %arg1: i32) -> (i32, i32, i32, i32) {
    %c0_i32 = arith.constant 0 : i32
    %c0_i32_0 = arith.constant 0 : i32
    %c0_i32_1 = arith.constant 0 : i32
    return %arg0, %c0_i32, %c0_i32_0, %arg1 : i32, i32, i32, i32
  }
  func.func @transform_1(%arg0: i32, %arg1: i32) -> (i32, i32, i32, i32) {
    %c0_i32 = arith.constant 0 : i32
    %c0_i32_0 = arith.constant 0 : i32
    %c0_i32_1 = arith.constant 0 : i32
    return %arg0, %c0_i32, %c0_i32_0, %arg1 : i32, i32, i32, i32
  }
}

</mosaic_0001>

<llo_original>
// kernel: tpu_custom_call.1
$region0: #{tpu_custom_call.1}
  #allocation0 [shape = 'u32[]', space=smem, size = 0x4, offset = 0x4, fixed_abs, tag = 'smem constant byte address 0x4 - core index']
  #allocation1 [shape = 'u32[144,128]{1,0:T(1,128)}', space=vmem, size = 0x12000, scoped, tag = 'internal scratch']
  %s0 = inlined_call_operand.hbm [shape: f32[2,3,4,256], index: 0, kind: input, shape index: {}]
  %s1 = inlined_call_operand.hbm [shape: f32[2,3,4,256], index: 1, kind: output, shape index: {}]
  %s2 = sld [smem:[#allocation0]]
  $region41: #{tpu_custom_call.1} parent=0
    _
  %s4 = ssub.s32 1, %s2
  %s5 = scalar_select 0, %s4, %s2
  $region1: #{tpu_custom_call.1} parent=0
    #allocation2 [shape = 'u8[24576]{0}', space=vmem, size = 0x6000, scoped, tag = 'input window, operand 0']
    #allocation3 [shape = 's32[2]{0}', space=sflag, size = 0x8, scoped, tag = 'scoped memory for tpu_custom_call.1']
    #allocation4 [shape = 's32[2]{0}', space=sflag, size = 0x8, scoped, tag = 'scoped memory for tpu_custom_call.1']
    #allocation5 [shape = 'u8[24576]{0}', space=vmem, size = 0x6000, scoped, tag = 'output window, operand 0']
    %6 = vsyncpa [#allocation3], 0
    %s7 = scalar_lea.sflag [#allocation3], 1
    %8 = vsyncpa %s7, 0
    %9 = vsyncpa [#allocation4], 0
    %s10 = scalar_lea.sflag [#allocation4], 1
    %11 = vsyncpa %s10, 0
    loop: start=0, step=1, limit=4
    $region2: #{tpu_custom_call.1} parent=1 // loop_pre_header
      _
    $region3: #{tpu_custom_call.1} parent=1 // loop_header
      %s13 = sphi 0, %s17
      %p14 = scmp.ge.s32.totalorder %s13, 4
      %s20 = sphi 0, %s32
      %s21 = sphi 0, %s28
      %s22 = sphi 0, %s20
      %s23 = sphi 0, %s21
      %s24 = sphi 0, %s22
      %s25 = sphi 0, %s23
      %s37 = sphi 0, %s39
      %s40 = sphi 0, %s37
      %s41 = sphi 0, %s40
      %s57 = sphi 0, %s41
      %s65 = sphi 0, %s67
      %s68 = sphi 0, %s65
      %s69 = sphi 0, %s68
      %s85 = sphi 0, %s69
    $region4: #{tpu_custom_call.1} parent=1 // loop_header_branch
      %16 = sbr.rel (%p14) target = $region8
    $region5: #{tpu_custom_call.1} parent=1 // loop_body
      %s18 = ssub.s32 %s13, 1
      %s19 = ssub.s32 %s13, 2
      %s26 = sadd.s32 1, %s21
      %p27 = scmp.ge.s32.totalorder %s26, 1
      %s28 = scalar_select %p27, 0, %s26
      %s29 = sadd.s32 1, %s20
      %s30 = scalar_select %p27, %s29, %s20
      %p31 = scmp.ge.s32.totalorder %s30, 2
      %s32 = scalar_select %p31, 0, %s30
      %s33 = ssub.s32 %s20, %s32
      %s34 = ssub.s32 %s21, %s28
      %s35 = sor.u32 %s33, %s34
      %p36 = scmp.eq.s32.totalorder %s35, 0
      %s38 = sadd.s32 %s37, 1
      %s39 = scalar_select %p36, %s37, %s38
      %p42 = pneg %p36
      %p43 = scmp.eq.s32.totalorder %s13, 1
      %p44 = por %p42, %p43
      %p45 = scmp.ne.s32.totalorder %s37, %s40
      %p46 = scmp.eq.s32.totalorder %s13, 0
      %p47 = por %p45, %p46
      %p48 = scmp.ne.s32.totalorder %s37, %s40
      %p49 = scmp.eq.s32.totalorder %s18, 1
      %p50 = por %p48, %p49
      %p51 = scmp.ne.s32.totalorder %s40, %s41
      %p52 = scmp.eq.s32.totalorder %s18, 0
      %p53 = por %p51, %p52
      %p54 = scmp.ne.s32.totalorder %s40, %s41
      %p55 = scmp.eq.s32.totalorder %s19, 1
      %p56 = por %p54, %p55
      %p58 = scmp.ne.s32.totalorder %s41, %s57
      %p59 = scmp.eq.s32.totalorder %s19, 0
      %p60 = por %p58, %p59
      %s61 = ssub.s32 %s20, %s32
      %s62 = ssub.s32 %s21, %s28
      %s63 = sor.u32 %s61, %s62
      %p64 = scmp.eq.s32.totalorder %s63, 0
      %s66 = sadd.s32 %s65, 1
      %s67 = scalar_select %p64, %s65, %s66
      %p70 = pneg %p64
      %p71 = scmp.eq.s32.totalorder %s13, 1
      %p72 = por %p70, %p71
      %p73 = scmp.ne.s32.totalorder %s65, %s68
      %p74 = scmp.eq.s32.totalorder %s13, 0
      %p75 = por %p73, %p74
      %p76 = scmp.ne.s32.totalorder %s65, %s68
      %p77 = scmp.eq.s32.totalorder %s18, 1
      %p78 = por %p76, %p77
      %p79 = scmp.ne.s32.totalorder %s68, %s69
      %p80 = scmp.eq.s32.totalorder %s18, 0
      %p81 = por %p79, %p80
      %p82 = scmp.ne.s32.totalorder %s68, %s69
      %p83 = scmp.eq.s32.totalorder %s19, 1
      %p84 = por %p82, %p83
      %p86 = scmp.ne.s32.totalorder %s69, %s85
      %p87 = scmp.eq.s32.totalorder %s19, 0
      %p88 = por %p86, %p87
      %p89 = scmp.le.s32.totalorder 1, %s13
      %p90 = scmp.lt.s32.totalorder %s13, 3
      %p91 = pnand %p89, %p90
      %p92 = pneg %p91
      // Predicated region
      $region9: #{tpu_custom_call.1} parent=5 // pred_check
        _
      $region10: #{tpu_custom_call.1} parent=5 // pred_check_branch
        %94 = sbr.rel (%p91) target = $region12
      $region11: #{tpu_custom_call.1} parent=5 // pred_region
        %s95 = ssub.s32 %s13, 1
      $region12: #{tpu_custom_call.1} parent=5 // pred_fallthru
        _
      %p96 = scmp.lt.s32.totalorder %s13, 2
      // Predicated region
      $region13: #{tpu_custom_call.1} parent=5 // pred_check
        %p97 = pneg %p96
      $region14: #{tpu_custom_call.1} parent=5 // pred_check_branch
        %99 = sbr.rel (%p97) target = $region16
      $region15: #{tpu_custom_call.1} parent=5 // pred_region
        // Predicated region
        $region17: #{tpu_custom_call.1} parent=15 // pred_check
          %p100 = pneg %p47
        $region18: #{tpu_custom_call.1} parent=15 // pred_check_branch
          %102 = sbr.rel (%p100) target = $region20
        $region19: #{tpu_custom_call.1} parent=15 // pred_region
          %s103 = sand.u32 %s37, 1
          %s104 = scalar_lea.sflag [#allocation3], %s103
          %s105 = sand.u32 %s37, 1
          %s106 = smul.addr %s105, 24
          %s107 = scalar_lea.vmem [#allocation2], %s106
          %s108 = smul.u32 2, %s21
          %s110 = ssub.s32 384, 384
          %111 = vsyncadd %s104, %s110
          %s112 = smul.addr %s20, 6
          %s113 = sadd.s32 %s108, %s112
          %s114 = smul.addr %s113, 64
          %s115 = scalar_lea.hbm %s0, %s114
          %s116 = sshll.u32 %s107, 4
          %s117 = int_to_ptr.vmem [resolvable:$true] %s116
          %122 = dma.hbm_to_vmem [thread:$0]  %s115, 384, %s117, %s104, 128, 128, 8
        $region20: #{tpu_custom_call.1} parent=15 // pred_fallthru
          _
      $region16: #{tpu_custom_call.1} parent=5 // pred_fallthru
        _
      %p123 = scmp.le.s32.totalorder 1, %s13
      %p124 = scmp.lt.s32.totalorder %s13, 3
      %p125 = pnand %p123, %p124
      %p126 = pneg %p125
      // Predicated region
      $region21: #{tpu_custom_call.1} parent=5 // pred_check
        _
      $region22: #{tpu_custom_call.1} parent=5 // pred_check_branch
        %128 = sbr.rel (%p125) target = $region24
      $region23: #{tpu_custom_call.1} parent=5 // pred_region
        %s129 = ssub.s32 %s13, 1
        %s130 = sand.u32 %s40, 1
        %s131 = scalar_lea.sflag [#allocation3], %s130
        %s132 = sand.u32 %s40, 1
        %s133 = smul.addr %s132, 24
        %s134 = scalar_lea.vmem [#allocation2], %s133
        // Predicated region
        $region25: #{tpu_custom_call.1} parent=23 // pred_check
          %p135 = pneg %p53
        $region26: #{tpu_custom_call.1} parent=23 // pred_check_branch
          %137 = sbr.rel (%p135) target = $region28
        $region27: #{tpu_custom_call.1} parent=23 // pred_region
          %138 = dma.done %s131, 384
        $region28: #{tpu_custom_call.1} parent=23 // pred_fallthru
          _
        %s139 = sand.u32 %s40, 1
        %s140 = scalar_lea.sflag [#allocation3], %s139
        %s141 = sand.u32 %s40, 1
        %s142 = smul.addr %s141, 24
        %s143 = scalar_lea.vmem [#allocation2], %s142
        %p144 = pneg %p53
        %p145 = pneg %p50
        %p146 = pneg %p81
        %p147 = pneg %p78
        %s148 = sand.u32 %s68, 1
        %s149 = scalar_lea.sflag [#allocation4], %s148
        %s150 = sand.u32 %s68, 1
        %s151 = smul.addr %s150, 24
        %s152 = scalar_lea.vmem [#allocation5], %s151
        %s153 = smul.u32 2, %s23
        %s154 = smul.u32 2, %s23
        %s155 = scalar_lea.vmem %s134, 8 [#allocation2]
        %v156 = vld [vmem:[%s155] ss:$4 sm:$0x3]
        %s157 = scalar_lea.vmem %s155, 8 [#allocation2]
        %v158 = vld [vmem:[%s157] ss:$4 sm:$0x3]
        %v159 = vlaneseq
        %vm160 = vcmp.ge.s32.totalorder %v159, 0
        %vm161 = vcmp.lt.s32.totalorder %v159, 256
        %vm162 = vmand %vm160, %vm161
        %163 = vst.msk [vmem:[%s152] ss:$4 sm:$0x3] %vm162, %v156
        %s164 = scalar_lea.vmem %s152, 8 [#allocation5]
        %165 = vst.msk [vmem:[%s164] ss:$4 sm:$0x3] %vm162, %v158
        %v166 = vld [vmem:[%s134] ss:$4 sm:$0x3]
        %s167 = scalar_lea.vmem %s152, 16 [#allocation5]
        %168 = vst.msk [vmem:[%s167] ss:$4 sm:$0x3] %vm162, %v166
        %s169 = scalar_lea.vmem %s134, 1 [#allocation2]
        %v170 = vld [vmem:[%s169] ss:$4 sm:$0x3]
        %s171 = scalar_lea.vmem %s134, 9 [#allocation2]
        %v172 = vld [vmem:[%s171] ss:$4 sm:$0x3]
        %s173 = scalar_lea.vmem %s152, 8 [#allocation5]
        %s174 = scalar_lea.vmem %s173, 1 [#allocation5]
        %175 = vst.msk [vmem:[%s174] ss:$4 sm:$0x3] %vm162, %v170
        %s176 = scalar_lea.vmem %s173, 9 [#allocation5]
        %177 = vst.msk [vmem:[%s176] ss:$4 sm:$0x3] %vm162, %v172
        %s178 = scalar_lea.vmem %s134, 16 [#allocation2]
        %s179 = scalar_lea.vmem %s178, 1 [#allocation2]
        %v180 = vld [vmem:[%s179] ss:$4 sm:$0x3]
        %s181 = scalar_lea.vmem %s152, 1 [#allocation5]
        %182 = vst.msk [vmem:[%s181] ss:$4 sm:$0x3] %vm162, %v180
        %v183 = vld [vmem:[%s134] sm:$0xcc]
        %v184 = vld [vmem:[%s134 + $0x8] sm:$0xcc]
        %v185 = vld [vmem:[%s134 + $0x10] sm:$0xcc]
        %186 = vst [vmem:[%s152] sm:$0xcc] %v183
        %187 = vst [vmem:[%s152 + $0x8] sm:$0xcc] %v184
        %188 = vst [vmem:[%s152 + $0x10] sm:$0xcc] %v185
        %s189 = sand.u32 %s68, 1
        %s190 = scalar_lea.sflag [#allocation4], %s189
        %s191 = sand.u32 %s68, 1
        %s192 = smul.addr %s191, 24
        %s193 = scalar_lea.vmem [#allocation5], %s192
        // Predicated region
        $region29: #{tpu_custom_call.1} parent=23 // pred_check
          %p194 = pneg %p78
        $region30: #{tpu_custom_call.1} parent=23 // pred_check_branch
          %196 = sbr.rel (%p194) target = $region32
        $region31: #{tpu_custom_call.1} parent=23 // pred_region
          %s197 = smul.u32 2, %s23
          %s199 = ssub.s32 384, 384
          %200 = vsyncadd %s190, %s199
          %s201 = smul.addr %s22, 6
          %s202 = sadd.s32 %s197, %s201
          %s203 = smul.addr %s202, 64
          %s204 = scalar_lea.hbm %s1, %s203
          %s205 = sshll.u32 %s193, 4
          %s206 = int_to_ptr.vmem [resolvable:$true] %s205
          %211 = dma.vmem_to_hbm [thread:$0]  %s206, 384, %s204, %s190, 128, 128, 8
        $region32: #{tpu_custom_call.1} parent=23 // pred_fallthru
          _
      $region24: #{tpu_custom_call.1} parent=5 // pred_fallthru
        _
      %p212 = scmp.le.s32.totalorder 2, %s13
      // Predicated region
      $region33: #{tpu_custom_call.1} parent=5 // pred_check
        %p213 = pneg %p212
      $region34: #{tpu_custom_call.1} parent=5 // pred_check_branch
        %215 = sbr.rel (%p213) target = $region36
      $region35: #{tpu_custom_call.1} parent=5 // pred_region
        %s216 = ssub.s32 %s13, 2
        // Predicated region
        $region37: #{tpu_custom_call.1} parent=35 // pred_check
          %p217 = pneg %p84
        $region38: #{tpu_custom_call.1} parent=35 // pred_check_branch
          %219 = sbr.rel (%p217) target = $region40
        $region39: #{tpu_custom_call.1} parent=35 // pred_region
          %s220 = sand.u32 %s69, 1
          %s221 = scalar_lea.sflag [#allocation4], %s220
          %s222 = sand.u32 %s69, 1
          %s223 = smul.addr %s222, 24
          %s224 = scalar_lea.vmem [#allocation5], %s223
          %225 = dma.done %s221, 384
        $region40: #{tpu_custom_call.1} parent=35 // pred_fallthru
          _
      $region36: #{tpu_custom_call.1} parent=5 // pred_fallthru
        _
    $region6: #{tpu_custom_call.1} parent=1 // loop_footer
      %s17 = sadd.s32 1, %s13
    $region7: #{tpu_custom_call.1} parent=1 // loop_footer_branch
      %12 = sbr.rel target = $region3
    $region8: #{tpu_custom_call.1} parent=1 // loop_exit
      _
    %226 = vsyncpa [#allocation3], 1
    %s227 = scalar_lea.sflag [#allocation3], 1
    %228 = vsyncpa %s227, 1
    %229 = vsyncpa [#allocation4], 1
    %s230 = scalar_lea.sflag [#allocation4], 1
    %231 = vsyncpa %s230, 1

</llo_original>
